<compile_context>
chip_gen: v7x
topology: tpu7x:2x2x1
jax: 0.10.0
libtpu: 0.0.40
codegen_flags: <defaults>
</compile_context>

<pallas_src>
import functools

import jax
import jax.numpy as jnp
from jax.experimental import pallas as pl
from jax.experimental.pallas import tpu as pltpu

_TWO_PI = 6.283185307179586
_INV_2_24 = 1.0 / float(1 << 24)
_ROW_TILE = 256  # rows per grid step on the batched path (~128 KiB f32 tile)


def _boxmuller_kernel(bits_ref, out_ref):
    """Turn uint32 random bits into i.i.d. N(0,1) samples.

    bits_ref: (2, rows, half) uint32 -- two independent words per output pair.
    out_ref:  (rows, out_d) float32 with out_d <= 2 * half.

    Both Box-Muller branches are used: the cos branch fills the first `half`
    lanes and the sin branch the next `half`, so each log/sqrt/cos/sin group
    yields two normals (halves the EUP work per sample).
    """
    out_d = out_ref.shape[-1]
    b1 = bits_ref[0]
    b2 = bits_ref[1]

    # Top 24 bits -> uniforms.  u1 in (0,1) so log(u1) is finite; u2 in [0,1).
    inv24 = jnp.float32(_INV_2_24)
    u1 = ((b1 >> 8).astype(jnp.float32) + jnp.float32(0.5)) * inv24
    u2 = (b2 >> 8).astype(jnp.float32) * inv24

    r = jnp.sqrt(jnp.float32(-2.0) * jnp.log(u1))
    theta = jnp.float32(_TWO_PI) * u2
    z = jnp.concatenate([r * jnp.cos(theta), r * jnp.sin(theta)], axis=-1)

    # 2*half may exceed out_d by one column (odd out_d); trim before the store.
    out_ref[...] = z[:, :out_d].astype(out_ref.dtype)


@functools.partial(jax.jit, static_argnames=("out_d", "batch"))
def dummy_forward_batched(key, *, out_d, batch=1):
    """Batched Dummy.forward: (batch, out_d) of i.i.d. N(0,1) samples."""
    out_d = int(out_d)
    batch = int(batch)
    half = (out_d + 1) // 2

    # Random bits generated with the portable JAX PRNG; the kernel does the
    # (EUP-heavy) Box-Muller transform.
    bits = jax.random.bits(key, (2, batch, half), dtype=jnp.uint32)

    # Row tiling only when it divides evenly and is actually worth pipelining.
    if batch > _ROW_TILE and batch % _ROW_TILE == 0:
        tile_rows = _ROW_TILE
    else:
        tile_rows = batch
    grid = (batch // tile_rows,)

    cost = pl.CostEstimate(
        flops=10 * batch * out_d,
        transcendentals=4 * batch * half,  # log + sqrt + cos + sin per pair
        bytes_accessed=bits.size * 4 + batch * out_d * 4,
    )

    return pl.pallas_call(
        _boxmuller_kernel,
        out_shape=jax.ShapeDtypeStruct((batch, out_d), jnp.float32),
        grid=grid,
        in_specs=[pl.BlockSpec((2, tile_rows, half), lambda i: (0, i, 0))],
        out_specs=pl.BlockSpec((tile_rows, out_d), lambda i: (i, 0)),
        compiler_params=pltpu.CompilerParams(
            dimension_semantics=("parallel",)),
        cost_estimate=cost,
    )(bits)


def dummy_forward(x, key, out_d):
    """Dummy.forward(x): x is ignored (per the module spec); returns (out_d,)."""
    del x  # the module ignores its input
    return dummy_forward_batched(key, out_d=out_d, batch=1)[0]


if __name__ == "__main__":
    in_d, out_d = 8, 4

    key = jax.random.PRNGKey(0)
    kx, kr = jax.random.split(key)
    x = jax.random.normal(kx, (in_d,), jnp.float32)  # ignored by forward()

    # Single forward pass (matches torch.randn(1, out_d)[0, :]).
    out = jax.block_until_ready(dummy_forward(x, kr, out_d))
    assert out.shape == (out_d,)
    assert bool(jnp.all(jnp.isfinite(out)))

    # Deterministic for a fixed key.
    out2 = jax.block_until_ready(dummy_forward(x, kr, out_d))
    assert jnp.array_equal(out, out2)

    # Batched call exercising the row grid + distribution sanity check
    # (512 x 128 = 65536 samples ~ N(0,1)).
    big = jax.block_until_ready(dummy_forward_batched(kr, out_d=128, batch=512))
    assert big.shape == (512, 128)
    assert bool(jnp.all(jnp.isfinite(big)))
    mean = float(jnp.mean(big))
    std = float(jnp.std(big))
    assert abs(mean) < 0.05, mean
    assert abs(std - 1.0) < 0.05, std

    print("KERNEL_OK")
</pallas_src>

<mosaic_0001>
module attributes {stable_mosaic.version = 11 : i64} {
  func.func @_boxmuller_kernel(%arg0: i32, %arg1: memref<2x1x2xi32, #tpu.memory_space<vmem>>, %arg2: memref<1x4xf32, #tpu.memory_space<vmem>>) attributes {dimension_semantics = [#tpu.dimension_semantics<parallel>], iteration_bounds = array<i64: 1>, scalar_prefetch = 0 : i64, scratch_operands = 0 : i64, tpu.core_type = #tpu.core_type<tc>, window_params = [{transform_indices = @transform_0, window_bounds = array<i64: 2, 1, 2>}, {transform_indices = @transform_1, window_bounds = array<i64: 1, 4>}]} {
    %c0 = arith.constant 0 : index
    %c0_0 = arith.constant 0 : index
    %c0_1 = arith.constant 0 : index
    %0 = vector.load %arg1[%c0, %c0_0, %c0_1] : memref<2x1x2xi32, #tpu.memory_space<vmem>>, vector<1x1x2xi32>
    %1 = vector.shape_cast %0 : vector<1x1x2xi32> to vector<1x2xi32>
    %c1 = arith.constant 1 : index
    %c0_2 = arith.constant 0 : index
    %c0_3 = arith.constant 0 : index
    %2 = vector.load %arg1[%c1, %c0_2, %c0_3] : memref<2x1x2xi32, #tpu.memory_space<vmem>>, vector<1x1x2xi32>
    %3 = vector.shape_cast %2 : vector<1x1x2xi32> to vector<1x2xi32>
    %c8_i32 = arith.constant 8 : i32
    %4 = vector.broadcast %c8_i32 : i32 to vector<1x2xi32>
    %5 = arith.shrui %1, %4 : vector<1x2xi32>
    %6 = arith.uitofp %5 : vector<1x2xi32> to vector<1x2xf32>
    %cst = arith.constant 5.000000e-01 : f32
    %7 = vector.broadcast %cst : f32 to vector<1x2xf32>
    %8 = arith.addf %6, %7 : vector<1x2xf32>
    %cst_4 = arith.constant 5.96046448E-8 : f32
    %9 = vector.broadcast %cst_4 : f32 to vector<1x2xf32>
    %10 = arith.mulf %8, %9 : vector<1x2xf32>
    %c8_i32_5 = arith.constant 8 : i32
    %11 = vector.broadcast %c8_i32_5 : i32 to vector<1x2xi32>
    %12 = arith.shrui %3, %11 : vector<1x2xi32>
    %13 = arith.uitofp %12 : vector<1x2xi32> to vector<1x2xf32>
    %cst_6 = arith.constant 5.96046448E-8 : f32
    %14 = vector.broadcast %cst_6 : f32 to vector<1x2xf32>
    %15 = arith.mulf %13, %14 : vector<1x2xf32>
    %16 = math.log %10 : vector<1x2xf32>
    %cst_7 = arith.constant -2.000000e+00 : f32
    %17 = vector.broadcast %cst_7 : f32 to vector<1x2xf32>
    %18 = arith.mulf %17, %16 : vector<1x2xf32>
    %19 = math.sqrt %18 : vector<1x2xf32>
    %cst_8 = arith.constant 6.28318548 : f32
    %20 = vector.broadcast %cst_8 : f32 to vector<1x2xf32>
    %21 = arith.mulf %20, %15 : vector<1x2xf32>
    %22 = math.cos %21 : vector<1x2xf32>
    %23 = arith.mulf %19, %22 : vector<1x2xf32>
    %24 = math.sin %21 : vector<1x2xf32>
    %25 = arith.mulf %19, %24 : vector<1x2xf32>
    %26 = tpu.concatenate %23, %25 in 1 : vector<1x2xf32>, vector<1x2xf32> -> vector<1x4xf32>
    %c0_9 = arith.constant 0 : index
    %c0_10 = arith.constant 0 : index
    %27 = vector.load %arg2[%c0_9, %c0_10] : memref<1x4xf32, #tpu.memory_space<vmem>>, vector<1x4xf32>
    tpu.vector_store %arg2[%c0_9, %c0_10], %26 {strides = array<i32>} : memref<1x4xf32, #tpu.memory_space<vmem>>, vector<1x4xf32>,
    return
  }
  func.func @transform_0(%arg0: i32) -> (i32, i32, i32) {
    %c0_i32 = arith.constant 0 : i32
    %c0_i32_0 = arith.constant 0 : i32
    %c0_i32_1 = arith.constant 0 : i32
    return %c0_i32, %arg0, %c0_i32_0 : i32, i32, i32
  }
  func.func @transform_1(%arg0: i32) -> (i32, i32) {
    %c0_i32 = arith.constant 0 : i32
    %c0_i32_0 = arith.constant 0 : i32
    return %arg0, %c0_i32 : i32, i32
  }
}

</mosaic_0001>

<llo_original>
// kernel: dummy_forward_batched.1
$region0: #{dummy_forward_batched.1}
  #allocation0 [shape = 'u32[]', space=smem, size = 0x4, offset = 0x4, fixed_abs, tag = 'smem constant byte address 0x4 - core index']
  #allocation1 [shape = 'u32[144,128]{1,0:T(1,128)}', space=vmem, size = 0x12000, scoped, tag = 'internal scratch']
  %s0 = inlined_call_operand.vmem [shape: u32[2,1,2], index: 0, kind: input, shape index: {}]
  %s1 = inlined_call_operand.hbm [shape: f32[1,4], index: 1, kind: output, shape index: {}]
  %s2 = sld [smem:[#allocation0]]
  $region14: #{dummy_forward_batched.1} parent=0
    _
  %s4 = ssub.s32 1, %s2
  %s5 = scalar_select 0, %s4, %s2
  $region1: #{dummy_forward_batched.1} parent=0
    #allocation2 [shape = 'u8[512]{0}', space=vmem, size = 0x400, scoped, tag = 'output window, operand 0, single buffered']
    #allocation3 [shape = 's32[1]{0}', space=sflag, size = 0x4, scoped, tag = 'scoped memory for dummy_forward_batched.1']
    %6 = vsyncpa [#allocation3], 0
    // Predicated region
    $region2: #{dummy_forward_batched.1} parent=1 // pred_check
      _
    $region3: #{dummy_forward_batched.1} parent=1 // pred_check_branch
      %8 = sbr.rel (0) target = $region5
    $region4: #{dummy_forward_batched.1} parent=1 // pred_region
      _
    $region5: #{dummy_forward_batched.1} parent=1 // pred_fallthru
      _
    %v9 = vld [vmem:[%s0] sm:$0x1]
    %s10 = scalar_lea.vmem %s0, 1
    %v11 = vld [vmem:[%s10] sm:$0x1]
    %v12 = vshrl.u32 %v9, 8
    %v13 = vshrl.u32 %v12, 16
    %v14 = vand.u32 %v12, 65535
    %v15 = vcvt.s32.f32 %v13
    %v16 = vmul.f32 %v15, 65536.0
    %v17 = vcvt.s32.f32 %v14
    %v18 = vadd.f32 %v16, %v17
    %v19 = vadd.f32 %v18, 0.5
    %v20 = vmul.f32 %v19, 5.9604645e-08
    %v21 = vshrl.u32 %v11, 8
    %v22 = vshrl.u32 %v21, 16
    %v23 = vand.u32 %v21, 65535
    %v24 = vcvt.s32.f32 %v22
    %v25 = vmul.f32 %v24, 65536.0
    %v26 = vcvt.s32.f32 %v23
    %v27 = vadd.f32 %v25, %v26
    %v28 = vmul.f32 %v27, 5.9604645e-08
    %v29 = vlog2.pop %v20
    %v30 = vmul.f32 %v29, 0.6931472
    %v31 = vmul.f32 %v30, -2.0
    %v32 = vrsqrt.pop %v31
    %v33 = vmul.f32 %v31, %v32
    %vm34 = vcmp.eq.f32.partialorder %v31, inf
    %v35 = vsel %vm34, %v31, %v33
    %vm36 = vcmp.eq.f32.partialorder %v31, 0.0
    %v37 = vand.u32 %v31, 2147483648
    %v38 = vsel %vm36, %v37, %v35
    %v39 = vmul.f32 %v28, 6.2831855
    %v40 = vand.u32 2147483647, %v39
    %vm41 = vcmp.le.f32.partialorder %v40, 0.7853982
    %vm42 = vcmp.lt.s32.totalorder %v39, 0
    %v43 = vand.u32 %v39, 2139095040
    %v44 = vshrl.u32 %v43, 23
    %v45 = vsub.s32 %v44, 127
    %v46 = vand.u32 2147483647, %v39
    %v47 = vand.u32 %v46, 8388607
    %v48 = vor.u32 %v47, 8388608
    %v49 = vsub.s32 0, %v48
    %v50 = vadd.s32 %v45, 1
    %vm51 = vcmp.gt.s32.totalorder %v50, 0
    %v52 = vsel %vm51, %v50, 0
    %v53 = vshrl.u32 %v52, 5
    %v54 = vand.u32 %v52, 31
    %v55 = vsub.s32 32, %v54
    %v56 = vshrl.u32 683565275, %v55
    %v57 = vshll.u32 683565275, %v54
    %v58 = vshrl.u32 2475754826, %v55
    %v59 = vor.u32 %v57, %v58
    %v60 = vshll.u32 2475754826, %v54
    %v61 = vshrl.u32 2131351028, %v55
    %v62 = vor.u32 %v60, %v61
    %v63 = vshll.u32 2131351028, %v54
    %v64 = vshrl.u32 2102212464, %v55
    %v65 = vor.u32 %v63, %v64
    %v66 = vshll.u32 2102212464, %v54
    %v67 = vshrl.u32 920167782, %v55
    %v68 = vor.u32 %v66, %v67
    %v69 = vshll.u32 920167782, %v54
    %v70 = vshrl.u32 1326507024, %v55
    %v71 = vor.u32 %v69, %v70
    %vm72 = vcmp.lt.s32.totalorder %v53, 1
    %vm73 = vcmp.lt.s32.totalorder %v53, 2
    %vm74 = vcmp.lt.s32.totalorder %v53, 3
    %vm75 = vcmp.lt.s32.totalorder %v53, 4
    %v76 = vsel %vm72, %v56, %v59
    %v77 = vsel %vm75, %v65, 2102212464
    %v78 = vsel %vm74, %v62, %v77
    %v79 = vsel %vm73, %v76, %v78
    %v80 = vsel %vm72, %v59, %v62
    %v81 = vsel %vm75, %v68, 920167782
    %v82 = vsel %vm74, %v65, %v81
    %v83 = vsel %vm73, %v80, %v82
    %v84 = vsel %vm72, %v62, %v65
    %v85 = vsel %vm75, %v71, 1326507024
    %v86 = vsel %vm74, %v68, %v85
    %v87 = vsel %vm73, %v84, %v86
    %v88 = vshll.u32 %v48, 8
    %v89 = vmul.u32.u64.compose %v88, %v87
    %v90 = vextract.low.u32 %v89
    %v91 = vextract.high.u32 %v89
    %v92 = vmul.u32.u64.compose %v88, %v83
    %v93 = vextract.low.u32 %v92
    %v94 = vextract.high.u32 %v92
    %v95 = vmul.u32 %v88, %v79
    %v96 = vadd.s32 %v91, %v93
    %vm97 = vc.u32 %v91, %v93
    %v98 = vadd.s32 %v94, 1
    %v99 = vsel %vm97, %v98, %v94
    %v100 = vadd.s32 %v95, %v99
    %v101 = vadd.s32 %v100, 536870912
    %v102 = vshrl.u32 %v101, 30
    %v103 = vshll.u32 %v102, 30
    %v104 = vsub.s32 %v100, %v103
    %vm105 = vcmp.lt.s32.totalorder %v104, 0
    %v106 = vsub.s32 0, %v104
    %v107 = vsel %vm105, %v106, %v104
    %v108 = vclz %v107
    %v109 = vsub.s32 %v108, 2
    %vm110 = vcmp.gt.s32.totalorder 0, %v109
    %v111 = vsel %vm110, 0, %v109
    %v112 = vsub.s32 32, %v111
    %v113 = vshll.u32 %v104, %v111
    %v114 = vshrl.u32 %v96, %v112
    %v115 = vor.u32 %v113, %v114
    %v116 = vsub.s32 4294967266, %v111
    %v117 = vadd.s32 %v116, 127
    %v118 = vshll.u32 %v117, 23
    %v119 = vor.u32 4788187, %v118
    %v120 = vand.u32 2147483647, %v119
    %v122 = vcvt.s32.f32 %v115
    %v123 = vmul.f32 %v122, %v120
    %v124 = vxor.u32 %v123, 2147483648
    %v125 = vsel %vm42, %v124, %v123
    %v126 = vsub.s32 4, %v102
    %v127 = vsel %vm42, %v126, %v102
    %v128 = vsel %vm41, %v39, %v125
    %v129 = vsel %vm41, 0, %v127
    %v130 = vcosq.f32.pop %v128
    %v131 = vsinq.f32.pop %v128
    %vm132 = vweird.f32 %v39
    %v133 = vand.u32 %v129, 3
    %vm134 = vcmp.lt.s32.totalorder %v133, 2
    %vm135 = vcmp.eq.s32.totalorder %v133, 0
    %v136 = vxor.u32 %v131, 2147483648
    %v137 = vsel %vm135, %v130, %v136
    %vm138 = vcmp.eq.s32.totalorder %v133, 2
    %v139 = vxor.u32 %v130, 2147483648
    %v140 = vsel %vm138, %v139, %v131
    %v141 = vsel %vm134, %v137, %v140
    %v142 = vsel %vm132, nan, %v141
    %v143 = vmul.f32 %v38, %v142
    %v144 = vand.u32 2147483647, %v39
    %vm145 = vcmp.le.f32.partialorder %v144, 0.7853982
    %vm146 = vcmp.lt.s32.totalorder %v39, 0
    %v147 = vand.u32 %v39, 2139095040
    %v148 = vshrl.u32 %v147, 23
    %v149 = vsub.s32 %v148, 127
    %v150 = vand.u32 2147483647, %v39
    %v151 = vand.u32 %v150, 8388607
    %v152 = vor.u32 %v151, 8388608
    %v153 = vsub.s32 0, %v152
    %v154 = vadd.s32 %v149, 1
    %vm155 = vcmp.gt.s32.totalorder %v154, 0
    %v156 = vsel %vm155, %v154, 0
    %v157 = vshrl.u32 %v156, 5
    %v158 = vand.u32 %v156, 31
    %v159 = vsub.s32 32, %v158
    %v160 = vshrl.u32 683565275, %v159
    %v161 = vshll.u32 683565275, %v158
    %v162 = vshrl.u32 2475754826, %v159
    %v163 = vor.u32 %v161, %v162
    %v164 = vshll.u32 2475754826, %v158
    %v165 = vshrl.u32 2131351028, %v159
    %v166 = vor.u32 %v164, %v165
    %v167 = vshll.u32 2131351028, %v158
    %v168 = vshrl.u32 2102212464, %v159
    %v169 = vor.u32 %v167, %v168
    %v170 = vshll.u32 2102212464, %v158
    %v171 = vshrl.u32 920167782, %v159
    %v172 = vor.u32 %v170, %v171
    %v173 = vshll.u32 920167782, %v158
    %v174 = vshrl.u32 1326507024, %v159
    %v175 = vor.u32 %v173, %v174
    %vm176 = vcmp.lt.s32.totalorder %v157, 1
    %vm177 = vcmp.lt.s32.totalorder %v157, 2
    %vm178 = vcmp.lt.s32.totalorder %v157, 3
    %vm179 = vcmp.lt.s32.totalorder %v157, 4
    %v180 = vsel %vm176, %v160, %v163
    %v181 = vsel %vm179, %v169, 2102212464
    %v182 = vsel %vm178, %v166, %v181
    %v183 = vsel %vm177, %v180, %v182
    %v184 = vsel %vm176, %v163, %v166
    %v185 = vsel %vm179, %v172, 920167782
    %v186 = vsel %vm178, %v169, %v185
    %v187 = vsel %vm177, %v184, %v186
    %v188 = vsel %vm176, %v166, %v169
    %v189 = vsel %vm179, %v175, 1326507024
    %v190 = vsel %vm178, %v172, %v189
    %v191 = vsel %vm177, %v188, %v190
    %v192 = vshll.u32 %v152, 8
    %v193 = vmul.u32.u64.compose %v192, %v191
    %v194 = vextract.low.u32 %v193
    %v195 = vextract.high.u32 %v193
    %v196 = vmul.u32.u64.compose %v192, %v187
    %v197 = vextract.low.u32 %v196
    %v198 = vextract.high.u32 %v196
    %v199 = vmul.u32 %v192, %v183
    %v200 = vadd.s32 %v195, %v197
    %vm201 = vc.u32 %v195, %v197
    %v202 = vadd.s32 %v198, 1
    %v203 = vsel %vm201, %v202, %v198
    %v204 = vadd.s32 %v199, %v203
    %v205 = vadd.s32 %v204, 536870912
    %v206 = vshrl.u32 %v205, 30
    %v207 = vshll.u32 %v206, 30
    %v208 = vsub.s32 %v204, %v207
    %vm209 = vcmp.lt.s32.totalorder %v208, 0
    %v210 = vsub.s32 0, %v208
    %v211 = vsel %vm209, %v210, %v208
    %v212 = vclz %v211
    %v213 = vsub.s32 %v212, 2
    %vm214 = vcmp.gt.s32.totalorder 0, %v213
    %v215 = vsel %vm214, 0, %v213
    %v216 = vsub.s32 32, %v215
    %v217 = vshll.u32 %v208, %v215
    %v218 = vshrl.u32 %v200, %v216
    %v219 = vor.u32 %v217, %v218
    %v220 = vsub.s32 4294967266, %v215
    %v221 = vadd.s32 %v220, 127
    %v222 = vshll.u32 %v221, 23
    %v223 = vor.u32 4788187, %v222
    %v224 = vand.u32 2147483647, %v223
    %v226 = vcvt.s32.f32 %v219
    %v227 = vmul.f32 %v226, %v224
    %v228 = vxor.u32 %v227, 2147483648
    %v229 = vsel %vm146, %v228, %v227
    %v230 = vsub.s32 4, %v206
    %v231 = vsel %vm146, %v230, %v206
    %v232 = vsel %vm145, %v39, %v229
    %v233 = vsel %vm145, 0, %v231
    %v234 = vcosq.f32.pop %v232
    %v235 = vsinq.f32.pop %v232
    %vm236 = vweird.f32 %v39
    %v237 = vadd.s32 %v233, 3
    %v238 = vand.u32 %v237, 3
    %vm239 = vcmp.lt.s32.totalorder %v238, 2
    %vm240 = vcmp.eq.s32.totalorder %v238, 0
    %v241 = vxor.u32 %v235, 2147483648
    %v242 = vsel %vm240, %v234, %v241
    %vm243 = vcmp.eq.s32.totalorder %v238, 2
    %v244 = vxor.u32 %v234, 2147483648
    %v245 = vsel %vm243, %v244, %v235
    %v246 = vsel %vm239, %v242, %v245
    %v247 = vsel %vm236, nan, %v246
    %v248 = vmul.f32 %v38, %v247
    %v250 = vlaneseq
    %v251 = vshrl.u32 %v250, 7
    %v252 = vsub.s32 0, %v251
    %v253 = vrot.slane %v248, %v252
    %254 = vrot.lane.b32.xlu0 %v253, 2
    %v255 = vpop.permute.xlu0 %254
    %vm257 = vcmask 15360
    %v258 = vsel %vm257, %v143, %v255
    %vm259 = vcmask 24576
    %260 = vst.msk [vmem:[#allocation2] sm:$0x1] %vm259, %v258
    // Predicated region
    $region6: #{dummy_forward_batched.1} parent=1 // pred_check
      _
    $region7: #{dummy_forward_batched.1} parent=1 // pred_check_branch
      %262 = sbr.rel (0) target = $region9
    $region8: #{dummy_forward_batched.1} parent=1 // pred_region
      %s264 = ssub.s32 16, 16
      %265 = vsyncadd [#allocation3], %s264
      %s267 = sshll.u32 [#allocation2], 4
      %s268 = int_to_ptr.vmem [resolvable:$true] %s267
      %270 = dma.vmem_to_hbm [thread:$0]  %s268, 16, %s1, [#allocation3]
    $region9: #{dummy_forward_batched.1} parent=1 // pred_fallthru
      _
    // Predicated region
    $region10: #{dummy_forward_batched.1} parent=1 // pred_check
      _
    $region11: #{dummy_forward_batched.1} parent=1 // pred_check_branch
      %272 = sbr.rel (0) target = $region13
    $region12: #{dummy_forward_batched.1} parent=1 // pred_region
      %273 = dma.done [#allocation3], 16
    $region13: #{dummy_forward_batched.1} parent=1 // pred_fallthru
      _
    %274 = vsyncpa [#allocation3], 1

</llo_original>
